<compile_context>
chip_gen: v6e
topology: v6e:2x2x1
jax: 0.10.0
libtpu: 0.0.40
codegen_flags: <defaults>
</compile_context>

<pallas_src>
import jax
import jax.numpy as jnp
from jax.experimental import pallas as pl
from jax.experimental.pallas import tpu as pltpu

channel = 3
img_height = 16
img_width = 16
D = img_height * img_width * channel  # 768

_TM_MAX = 512  # batch tile cap (multiple of 8; fits v5e scoped VMEM default)


def _round_up(n, m):
    return ((n + m - 1) // m) * m


def mynet_kernel(x_ref,
                 w1_ref, b1_ref,
                 w24_ref, b24_ref,
                 w5_ref, b5_ref,
                 out_ref):
    # x_ref: [TM, D] batch tile; weights pre-transposed to (in, out).
    x = x_ref[...]

    # enc1: D -> 64
    h = jnp.dot(x, w1_ref[...], preferred_element_type=jnp.float32) + b1_ref[...]
    # enc2 . dec2 fused: 64 -> 64 (exact, purely affine chain)
    h = jnp.dot(h, w24_ref[...], preferred_element_type=jnp.float32) + b24_ref[...]
    # dec1: 64 -> D
    y = jnp.dot(h, w5_ref[...], preferred_element_type=jnp.float32) + b5_ref[...]

    out_ref[...] = y.astype(out_ref.dtype)


def prepare_params(torch_style_params):
    """One-time conversion: PyTorch (out,in)/(out,) -> kernel-ready (in,out)/(1,out),
    with enc2.dec2 fused into a single 64x64 affine."""
    (w1, b1), (w2, b2), (w4, b4), (w5, b5) = torch_style_params

    w1t = jnp.asarray(w1).T                       # (D, 64)
    b1r = jnp.asarray(b1).reshape(1, -1)          # (1, 64)

    w2t = jnp.asarray(w2).T                       # (64, 32)
    w4t = jnp.asarray(w4).T                       # (32, 64)
    w24 = w2t @ w4t                               # (64, 64)
    b24 = (jnp.asarray(b2) @ w4t + jnp.asarray(b4)).reshape(1, -1)  # (1, 64)

    w5t = jnp.asarray(w5).T                       # (64, D)
    b5r = jnp.asarray(b5).reshape(1, -1)          # (1, D)

    return (w1t, b1r, w24, b24, w5t, b5r)


def mynet_forward(x_nchw, kernel_params):
    """x_nchw: [mb, C, H, W] float32. kernel_params from prepare_params().
    Returns [mb, D] float32."""
    mb = x_nchw.shape[0]
    x_flat = x_nchw.reshape(mb, -1).astype(jnp.float32)  # == torch x.view(mb, -1)

    w1t, b1r, w24, b24, w5t, b5r = kernel_params

    # Pad batch to a multiple of the tile so blocks divide evenly.
    mb8 = _round_up(mb, 8)
    tm = min(_TM_MAX, mb8)
    mb_pad = _round_up(mb8, tm)
    if mb_pad != mb:
        x_flat = jnp.pad(x_flat, ((0, mb_pad - mb), (0, 0)))

    grid = (mb_pad // tm,)

    # x / out: tiled over the batch; weights/biases: resident (constant index_map).
    x_spec = pl.BlockSpec((tm, D), lambda i: (i, 0))
    const_spec = lambda a: pl.BlockSpec(a.shape, lambda i: (0, 0))
    in_specs = [
        x_spec,
        const_spec(w1t), const_spec(b1r),
        const_spec(w24), const_spec(b24),
        const_spec(w5t), const_spec(b5r),
    ]
    out_spec = pl.BlockSpec((tm, D), lambda i: (i, 0))
    out_shape = jax.ShapeDtypeStruct((mb_pad, D), jnp.float32)

    out = pl.pallas_call(
        mynet_kernel,
        out_shape=out_shape,
        grid=grid,
        in_specs=in_specs,
        out_specs=out_spec,
        compiler_params=pltpu.CompilerParams(
            dimension_semantics=("parallel",),
        ),
    )(x_flat, w1t, b1r, w24, b24, w5t, b5r)

    return out[:mb]


def init_params(key):
    """Deterministic init matching PyTorch Linear default:
    U(-1/sqrt(fan_in), +1/sqrt(fan_in)); stored in PyTorch (out, in) layout."""
    def linear(key, fan_in, fan_out):
        kw, kb = jax.random.split(key)
        bound = 1.0 / jnp.sqrt(fan_in)
        w = jax.random.uniform(kw, (fan_out, fan_in), jnp.float32, -bound, bound)
        b = jax.random.uniform(kb, (fan_out,), jnp.float32, -bound, bound)
        return w, b

    keys = jax.random.split(key, 4)
    enc1 = linear(keys[0], D, 64)
    enc2 = linear(keys[1], 64, 32)
    dec2 = linear(keys[2], 32, 64)
    dec1 = linear(keys[3], 64, D)
    # enc3 / dec3 exist in __init__ but are unused in forward — omitted here.
    return (enc1, enc2, dec2, dec1)


def reference_forward(x_nchw, torch_style_params):
    mb = x_nchw.shape[0]
    x = x_nchw.reshape(mb, -1)
    (w1, b1), (w2, b2), (w4, b4), (w5, b5) = torch_style_params
    x = x @ w1.T + b1
    x = x @ w2.T + b2
    x = x @ w4.T + b4
    x = x @ w5.T + b5
    return x


if __name__ == "__main__":
    key = jax.random.PRNGKey(0)
    kx, kp = jax.random.split(key)

    mb = 2
    x = jax.random.normal(kx, (mb, channel, img_height, img_width), jnp.float32)
    params = init_params(kp)

    kernel_params = prepare_params(params)  # one-time: transpose + fuse enc2.dec2

    out = mynet_forward(x, kernel_params)
    out = jax.block_until_ready(out)

    ref = reference_forward(x, params)
    assert out.shape == (mb, D), out.shape
    assert jnp.allclose(out, ref, atol=1e-4, rtol=1e-4), "mismatch vs reference"

    print("KERNEL_OK")
</pallas_src>

<mosaic_0001>
module attributes {stable_mosaic.version = 11 : i64} {
  func.func @mynet_kernel(%arg0: i32, %arg1: memref<8x768xf32, #tpu.memory_space<vmem>>, %arg2: memref<768x64xf32, #tpu.memory_space<vmem>>, %arg3: memref<1x64xf32, #tpu.memory_space<vmem>>, %arg4: memref<64x64xf32, #tpu.memory_space<vmem>>, %arg5: memref<1x64xf32, #tpu.memory_space<vmem>>, %arg6: memref<64x768xf32, #tpu.memory_space<vmem>>, %arg7: memref<1x768xf32, #tpu.memory_space<vmem>>, %arg8: memref<8x768xf32, #tpu.memory_space<vmem>>) attributes {dimension_semantics = [#tpu.dimension_semantics<parallel>], iteration_bounds = array<i64: 1>, scalar_prefetch = 0 : i64, scratch_operands = 0 : i64, tpu.core_type = #tpu.core_type<tc>, window_params = [{transform_indices = @transform_0, window_bounds = array<i64: 8, 768>}, {pipeline_mode = #tpu.pipeline_mode<synchronous>, transform_indices = @transform_1, window_bounds = array<i64: 768, 64>}, {pipeline_mode = #tpu.pipeline_mode<synchronous>, transform_indices = @transform_2, window_bounds = array<i64: 1, 64>}, {pipeline_mode = #tpu.pipeline_mode<synchronous>, transform_indices = @transform_3, window_bounds = array<i64: 64, 64>}, {pipeline_mode = #tpu.pipeline_mode<synchronous>, transform_indices = @transform_4, window_bounds = array<i64: 1, 64>}, {pipeline_mode = #tpu.pipeline_mode<synchronous>, transform_indices = @transform_5, window_bounds = array<i64: 64, 768>}, {pipeline_mode = #tpu.pipeline_mode<synchronous>, transform_indices = @transform_6, window_bounds = array<i64: 1, 768>}, {transform_indices = @transform_7, window_bounds = array<i64: 8, 768>}]} {
    %c0 = arith.constant 0 : index
    %c0_0 = arith.constant 0 : index
    %0 = vector.load %arg1[%c0, %c0_0] : memref<8x768xf32, #tpu.memory_space<vmem>>, vector<8x768xf32>
    %c0_1 = arith.constant 0 : index
    %c0_2 = arith.constant 0 : index
    %1 = vector.load %arg2[%c0_1, %c0_2] : memref<768x64xf32, #tpu.memory_space<vmem>>, vector<768x64xf32>
    %cst = arith.constant dense<0.000000e+00> : vector<8x64xf32>
    %2 = tpu.matmul %0, %1, %cst {dimension_numbers = #tpu.dot_dimension_numbers<[1], [0], [0], [1], [0, 0, 1, 1], [], []>} : vector<8x768xf32>, vector<768x64xf32>, vector<8x64xf32> -> vector<8x64xf32>
    %c0_3 = arith.constant 0 : index
    %c0_4 = arith.constant 0 : index
    %3 = vector.load %arg3[%c0_3, %c0_4] : memref<1x64xf32, #tpu.memory_space<vmem>>, vector<1x64xf32>
    %4 = vector.broadcast %3 : vector<1x64xf32> to vector<8x64xf32>
    %5 = arith.addf %2, %4 : vector<8x64xf32>
    %c0_5 = arith.constant 0 : index
    %c0_6 = arith.constant 0 : index
    %6 = vector.load %arg4[%c0_5, %c0_6] : memref<64x64xf32, #tpu.memory_space<vmem>>, vector<64x64xf32>
    %cst_7 = arith.constant dense<0.000000e+00> : vector<8x64xf32>
    %7 = tpu.matmul %5, %6, %cst_7 {dimension_numbers = #tpu.dot_dimension_numbers<[1], [0], [0], [1], [0, 0, 1, 1], [], []>} : vector<8x64xf32>, vector<64x64xf32>, vector<8x64xf32> -> vector<8x64xf32>
    %c0_8 = arith.constant 0 : index
    %c0_9 = arith.constant 0 : index
    %8 = vector.load %arg5[%c0_8, %c0_9] : memref<1x64xf32, #tpu.memory_space<vmem>>, vector<1x64xf32>
    %9 = vector.broadcast %8 : vector<1x64xf32> to vector<8x64xf32>
    %10 = arith.addf %7, %9 : vector<8x64xf32>
    %c0_10 = arith.constant 0 : index
    %c0_11 = arith.constant 0 : index
    %11 = vector.load %arg6[%c0_10, %c0_11] : memref<64x768xf32, #tpu.memory_space<vmem>>, vector<64x768xf32>
    %cst_12 = arith.constant dense<0.000000e+00> : vector<8x768xf32>
    %12 = tpu.matmul %10, %11, %cst_12 {dimension_numbers = #tpu.dot_dimension_numbers<[1], [0], [0], [1], [0, 0, 1, 1], [], []>} : vector<8x64xf32>, vector<64x768xf32>, vector<8x768xf32> -> vector<8x768xf32>
    %c0_13 = arith.constant 0 : index
    %c0_14 = arith.constant 0 : index
    %13 = vector.load %arg7[%c0_13, %c0_14] : memref<1x768xf32, #tpu.memory_space<vmem>>, vector<1x768xf32>
    %14 = vector.broadcast %13 : vector<1x768xf32> to vector<8x768xf32>
    %15 = arith.addf %12, %14 : vector<8x768xf32>
    %c0_15 = arith.constant 0 : index
    %c0_16 = arith.constant 0 : index
    %16 = vector.load %arg8[%c0_15, %c0_16] : memref<8x768xf32, #tpu.memory_space<vmem>>, vector<8x768xf32>
    tpu.vector_store %arg8[%c0_15, %c0_16], %15 {strides = array<i32>} : memref<8x768xf32, #tpu.memory_space<vmem>>, vector<8x768xf32>,
    return
  }
  func.func @transform_0(%arg0: i32) -> (i32, i32) {
    %c0_i32 = arith.constant 0 : i32
    %c0_i32_0 = arith.constant 0 : i32
    return %arg0, %c0_i32 : i32, i32
  }
  func.func @transform_1(%arg0: i32) -> (i32, i32) {
    %c0_i32 = arith.constant 0 : i32
    %c0_i32_0 = arith.constant 0 : i32
    %c0_i32_1 = arith.constant 0 : i32
    return %c0_i32, %c0_i32_0 : i32, i32
  }
  func.func @transform_2(%arg0: i32) -> (i32, i32) {
    %c0_i32 = arith.constant 0 : i32
    %c0_i32_0 = arith.constant 0 : i32
    %c0_i32_1 = arith.constant 0 : i32
    return %c0_i32, %c0_i32_0 : i32, i32
  }
  func.func @transform_3(%arg0: i32) -> (i32, i32) {
    %c0_i32 = arith.constant 0 : i32
    %c0_i32_0 = arith.constant 0 : i32
    %c0_i32_1 = arith.constant 0 : i32
    return %c0_i32, %c0_i32_0 : i32, i32
  }
  func.func @transform_4(%arg0: i32) -> (i32, i32) {
    %c0_i32 = arith.constant 0 : i32
    %c0_i32_0 = arith.constant 0 : i32
    %c0_i32_1 = arith.constant 0 : i32
    return %c0_i32, %c0_i32_0 : i32, i32
  }
  func.func @transform_5(%arg0: i32) -> (i32, i32) {
    %c0_i32 = arith.constant 0 : i32
    %c0_i32_0 = arith.constant 0 : i32
    %c0_i32_1 = arith.constant 0 : i32
    return %c0_i32, %c0_i32_0 : i32, i32
  }
  func.func @transform_6(%arg0: i32) -> (i32, i32) {
    %c0_i32 = arith.constant 0 : i32
    %c0_i32_0 = arith.constant 0 : i32
    %c0_i32_1 = arith.constant 0 : i32
    return %c0_i32, %c0_i32_0 : i32, i32
  }
  func.func @transform_7(%arg0: i32) -> (i32, i32) {
    %c0_i32 = arith.constant 0 : i32
    %c0_i32_0 = arith.constant 0 : i32
    return %arg0, %c0_i32 : i32, i32
  }
}

</mosaic_0001>

<llo_original>
// kernel: tpu_custom_call.1
$region0: #{tpu_custom_call.1}
  #allocation0 [shape = 'u32[]', space=smem, size = 0x4, offset = 0x4, fixed_abs, tag = 'smem constant byte address 0x4 - core index']
  #allocation1 [shape = 'u32[144,128]{1,0:T(1,128)}', space=vmem, size = 0x12000, scoped, tag = 'internal scratch']
  %s0 = inlined_call_operand.vmem [shape: f32[8,768], index: 0, kind: input, shape index: {}]
  %s1 = inlined_call_operand.vmem [shape: f32[768,64], index: 1, kind: input, shape index: {}]
  %s2 = inlined_call_operand.vmem [shape: f32[1,64], index: 2, kind: input, shape index: {}]
  %s3 = inlined_call_operand.vmem [shape: f32[64,64], index: 3, kind: input, shape index: {}]
  %s4 = inlined_call_operand.vmem [shape: f32[1,64], index: 4, kind: input, shape index: {}]
  %s5 = inlined_call_operand.vmem [shape: f32[64,768], index: 5, kind: input, shape index: {}]
  %s6 = inlined_call_operand.vmem [shape: f32[1,768], index: 6, kind: input, shape index: {}]
  %s7 = inlined_call_operand.hbm [shape: f32[8,768], index: 7, kind: output, shape index: {}]
  %s8 = sld [smem:[#allocation0]]
  $region38: #{tpu_custom_call.1} parent=0
    _
  %s10 = ssub.s32 1, %s8
  %s11 = scalar_select 0, %s10, %s8
  $region1: #{tpu_custom_call.1} parent=0
    #allocation2 [shape = 'u8[24576]{0}', space=vmem, size = 0x6000, scoped, tag = 'output window, operand 0, single buffered']
    #allocation3 [shape = 's32[1]{0}', space=sflag, size = 0x4, scoped, tag = 'scoped memory for tpu_custom_call.1']
    %12 = vsyncpa [#allocation3], 0
    // Predicated region
    $region2: #{tpu_custom_call.1} parent=1 // pred_check
      _
    $region3: #{tpu_custom_call.1} parent=1 // pred_check_branch
      %14 = sbr.rel (0) target = $region5
    $region4: #{tpu_custom_call.1} parent=1 // pred_region
      _
    $region5: #{tpu_custom_call.1} parent=1 // pred_fallthru
      _
    // Predicated region
    $region6: #{tpu_custom_call.1} parent=1 // pred_check
      _
    $region7: #{tpu_custom_call.1} parent=1 // pred_check_branch
      %16 = sbr.rel (0) target = $region9
    $region8: #{tpu_custom_call.1} parent=1 // pred_region
      _
    $region9: #{tpu_custom_call.1} parent=1 // pred_fallthru
      _
    // Predicated region
    $region10: #{tpu_custom_call.1} parent=1 // pred_check
      _
    $region11: #{tpu_custom_call.1} parent=1 // pred_check_branch
      %18 = sbr.rel (0) target = $region13
    $region12: #{tpu_custom_call.1} parent=1 // pred_region
      _
    $region13: #{tpu_custom_call.1} parent=1 // pred_fallthru
      _
    // Predicated region
    $region14: #{tpu_custom_call.1} parent=1 // pred_check
      _
    $region15: #{tpu_custom_call.1} parent=1 // pred_check_branch
      %20 = sbr.rel (0) target = $region17
    $region16: #{tpu_custom_call.1} parent=1 // pred_region
      _
    $region17: #{tpu_custom_call.1} parent=1 // pred_fallthru
      _
    // Predicated region
    $region18: #{tpu_custom_call.1} parent=1 // pred_check
      _
    $region19: #{tpu_custom_call.1} parent=1 // pred_check_branch
      %22 = sbr.rel (0) target = $region21
    $region20: #{tpu_custom_call.1} parent=1 // pred_region
      _
    $region21: #{tpu_custom_call.1} parent=1 // pred_fallthru
      _
    // Predicated region
    $region22: #{tpu_custom_call.1} parent=1 // pred_check
      _
    $region23: #{tpu_custom_call.1} parent=1 // pred_check_branch
      %24 = sbr.rel (0) target = $region25
    $region24: #{tpu_custom_call.1} parent=1 // pred_region
      _
    $region25: #{tpu_custom_call.1} parent=1 // pred_fallthru
      _
    // Predicated region
    $region26: #{tpu_custom_call.1} parent=1 // pred_check
      _
    $region27: #{tpu_custom_call.1} parent=1 // pred_check_branch
      %26 = sbr.rel (0) target = $region29
    $region28: #{tpu_custom_call.1} parent=1 // pred_region
      _
    $region29: #{tpu_custom_call.1} parent=1 // pred_fallthru
      _
    %v27 = vld [vmem:[%s0] sm:$0xff]
    %v28 = vld [vmem:[%s0 + $0x8] sm:$0xff]
    %v29 = vld [vmem:[%s0 + $0x10] sm:$0xff]
    %v30 = vld [vmem:[%s0 + $0x18] sm:$0xff]
    %v31 = vld [vmem:[%s0 + $0x20] sm:$0xff]
    %v32 = vld [vmem:[%s0 + $0x28] sm:$0xff]
    %v33 = vld [vmem:[%s1] sm:$0xff]
    %v34 = vld [vmem:[%s1 + $0x8] sm:$0xff]
    %v35 = vld [vmem:[%s1 + $0x10] sm:$0xff]
    %v36 = vld [vmem:[%s1 + $0x18] sm:$0xff]
    %v37 = vld [vmem:[%s1 + $0x20] sm:$0xff]
    %v38 = vld [vmem:[%s1 + $0x28] sm:$0xff]
    %v39 = vld [vmem:[%s1 + $0x30] sm:$0xff]
    %v40 = vld [vmem:[%s1 + $0x38] sm:$0xff]
    %v41 = vld [vmem:[%s1 + $0x40] sm:$0xff]
    %v42 = vld [vmem:[%s1 + $0x48] sm:$0xff]
    %v43 = vld [vmem:[%s1 + $0x50] sm:$0xff]
    %v44 = vld [vmem:[%s1 + $0x58] sm:$0xff]
    %v45 = vld [vmem:[%s1 + $0x60] sm:$0xff]
    %v46 = vld [vmem:[%s1 + $0x68] sm:$0xff]
    %v47 = vld [vmem:[%s1 + $0x70] sm:$0xff]
    %v48 = vld [vmem:[%s1 + $0x78] sm:$0xff]
    %v49 = vld [vmem:[%s1 + $0x80] sm:$0xff]
    %v50 = vld [vmem:[%s1 + $0x88] sm:$0xff]
    %v51 = vld [vmem:[%s1 + $0x90] sm:$0xff]
    %v52 = vld [vmem:[%s1 + $0x98] sm:$0xff]
    %v53 = vld [vmem:[%s1 + $0xa0] sm:$0xff]
    %v54 = vld [vmem:[%s1 + $0xa8] sm:$0xff]
    %v55 = vld [vmem:[%s1 + $0xb0] sm:$0xff]
    %v56 = vld [vmem:[%s1 + $0xb8] sm:$0xff]
    %v57 = vld [vmem:[%s1 + $0xc0] sm:$0xff]
    %v58 = vld [vmem:[%s1 + $0xc8] sm:$0xff]
    %v59 = vld [vmem:[%s1 + $0xd0] sm:$0xff]
    %v60 = vld [vmem:[%s1 + $0xd8] sm:$0xff]
    %v61 = vld [vmem:[%s1 + $0xe0] sm:$0xff]
    %v62 = vld [vmem:[%s1 + $0xe8] sm:$0xff]
    %v63 = vld [vmem:[%s1 + $0xf0] sm:$0xff]
    %v64 = vld [vmem:[%s1 + $0xf8] sm:$0xff]
    %v65 = vld [vmem:[%s1 + $0x100] sm:$0xff]
    %v66 = vld [vmem:[%s1 + $0x108] sm:$0xff]
    %v67 = vld [vmem:[%s1 + $0x110] sm:$0xff]
    %v68 = vld [vmem:[%s1 + $0x118] sm:$0xff]
    %v69 = vld [vmem:[%s1 + $0x120] sm:$0xff]
    %v70 = vld [vmem:[%s1 + $0x128] sm:$0xff]
    %v71 = vld [vmem:[%s1 + $0x130] sm:$0xff]
    %v72 = vld [vmem:[%s1 + $0x138] sm:$0xff]
    %v73 = vld [vmem:[%s1 + $0x140] sm:$0xff]
    %v74 = vld [vmem:[%s1 + $0x148] sm:$0xff]
    %v75 = vld [vmem:[%s1 + $0x150] sm:$0xff]
    %v76 = vld [vmem:[%s1 + $0x158] sm:$0xff]
    %v77 = vld [vmem:[%s1 + $0x160] sm:$0xff]
    %v78 = vld [vmem:[%s1 + $0x168] sm:$0xff]
    %v79 = vld [vmem:[%s1 + $0x170] sm:$0xff]
    %v80 = vld [vmem:[%s1 + $0x178] sm:$0xff]
    %v81 = vld [vmem:[%s1 + $0x180] sm:$0xff]
    %v82 = vld [vmem:[%s1 + $0x188] sm:$0xff]
    %v83 = vld [vmem:[%s1 + $0x190] sm:$0xff]
    %v84 = vld [vmem:[%s1 + $0x198] sm:$0xff]
    %v85 = vld [vmem:[%s1 + $0x1a0] sm:$0xff]
    %v86 = vld [vmem:[%s1 + $0x1a8] sm:$0xff]
    %v87 = vld [vmem:[%s1 + $0x1b0] sm:$0xff]
    %v88 = vld [vmem:[%s1 + $0x1b8] sm:$0xff]
    %v89 = vld [vmem:[%s1 + $0x1c0] sm:$0xff]
    %v90 = vld [vmem:[%s1 + $0x1c8] sm:$0xff]
    %v91 = vld [vmem:[%s1 + $0x1d0] sm:$0xff]
    %v92 = vld [vmem:[%s1 + $0x1d8] sm:$0xff]
    %v93 = vld [vmem:[%s1 + $0x1e0] sm:$0xff]
    %v94 = vld [vmem:[%s1 + $0x1e8] sm:$0xff]
    %v95 = vld [vmem:[%s1 + $0x1f0] sm:$0xff]
    %v96 = vld [vmem:[%s1 + $0x1f8] sm:$0xff]
    %v97 = vld [vmem:[%s1 + $0x200] sm:$0xff]
    %v98 = vld [vmem:[%s1 + $0x208] sm:$0xff]
    %v99 = vld [vmem:[%s1 + $0x210] sm:$0xff]
    %v100 = vld [vmem:[%s1 + $0x218] sm:$0xff]
    %v101 = vld [vmem:[%s1 + $0x220] sm:$0xff]
    %v102 = vld [vmem:[%s1 + $0x228] sm:$0xff]
    %v103 = vld [vmem:[%s1 + $0x230] sm:$0xff]
    %v104 = vld [vmem:[%s1 + $0x238] sm:$0xff]
    %v105 = vld [vmem:[%s1 + $0x240] sm:$0xff]
    %v106 = vld [vmem:[%s1 + $0x248] sm:$0xff]
    %v107 = vld [vmem:[%s1 + $0x250] sm:$0xff]
    %v108 = vld [vmem:[%s1 + $0x258] sm:$0xff]
    %v109 = vld [vmem:[%s1 + $0x260] sm:$0xff]
    %v110 = vld [vmem:[%s1 + $0x268] sm:$0xff]
    %v111 = vld [vmem:[%s1 + $0x270] sm:$0xff]
    %v112 = vld [vmem:[%s1 + $0x278] sm:$0xff]
    %v113 = vld [vmem:[%s1 + $0x280] sm:$0xff]
    %v114 = vld [vmem:[%s1 + $0x288] sm:$0xff]
    %v115 = vld [vmem:[%s1 + $0x290] sm:$0xff]
    %v116 = vld [vmem:[%s1 + $0x298] sm:$0xff]
    %v117 = vld [vmem:[%s1 + $0x2a0] sm:$0xff]
    %v118 = vld [vmem:[%s1 + $0x2a8] sm:$0xff]
    %v119 = vld [vmem:[%s1 + $0x2b0] sm:$0xff]
    %v120 = vld [vmem:[%s1 + $0x2b8] sm:$0xff]
    %v121 = vld [vmem:[%s1 + $0x2c0] sm:$0xff]
    %v122 = vld [vmem:[%s1 + $0x2c8] sm:$0xff]
    %v123 = vld [vmem:[%s1 + $0x2d0] sm:$0xff]
    %v124 = vld [vmem:[%s1 + $0x2d8] sm:$0xff]
    %v125 = vld [vmem:[%s1 + $0x2e0] sm:$0xff]
    %v126 = vld [vmem:[%s1 + $0x2e8] sm:$0xff]
    %v127 = vld [vmem:[%s1 + $0x2f0] sm:$0xff]
    %v128 = vld [vmem:[%s1 + $0x2f8] sm:$0xff]
    %v129 = vld [vmem:[%s2] sm:$0x1]
    %v131 = vlaneseq
    %v132 = vshrl.u32 %v131, 7
    %v133 = vsub.s32 0, %v132
    %v134 = vrot.slane %v129, %v133
    %136 = vmatprep.subr.mxu0 0.0
    %137 = vmatpush1.msra.mxu0 %v48
    %138 = vmatprep.subr.mxu0 0.0
    %139 = vmatpush1.msra.mxu0 %v47
    %140 = vmatprep.subr.mxu0 0.0
    %141 = vmatpush1.msra.mxu0 %v46
    %142 = vmatprep.subr.mxu0 0.0
    %143 = vmatpush1.msra.mxu0 %v45
    %144 = vmatprep.subr.mxu0 0.0
    %145 = vmatpush1.msra.mxu0 %v44
    %146 = vmatprep.subr.mxu0 0.0
    %147 = vmatpush1.msra.mxu0 %v43
    %148 = vmatprep.subr.mxu0 0.0
    %149 = vmatpush1.msra.mxu0 %v42
    %150 = vmatprep.subr.mxu0 0.0
    %151 = vmatpush1.msra.mxu0 %v41
    %152 = vmatprep.subr.mxu0 0.0
    %153 = vmatpush1.msra.mxu0 %v40
    %154 = vmatprep.subr.mxu0 0.0
    %155 = vmatpush1.msra.mxu0 %v39
    %156 = vmatprep.subr.mxu0 0.0
    %157 = vmatpush1.msra.mxu0 %v38
    %158 = vmatprep.subr.mxu0 0.0
    %159 = vmatpush1.msra.mxu0 %v37
    %160 = vmatprep.subr.mxu0 0.0
    %161 = vmatpush1.msra.mxu0 %v36
    %162 = vmatprep.subr.mxu0 0.0
    %163 = vmatpush1.msra.mxu0 %v35
    %164 = vmatprep.subr.mxu0 0.0
    %165 = vmatpush1.msra.mxu0 %v34
    %166 = vmatprep.subr.mxu0 0.0
    %167 = vmatpush1.msra.mxu0 %v33
    %168 = vmatprep.subr.mxu0 0.0
    %169 = vmatpush2.msra.mxu0 %v64
    %170 = vmatprep.subr.mxu0 0.0
    %171 = vmatpush2.msra.mxu0 %v63
    %172 = vmatprep.subr.mxu0 0.0
    %173 = vmatpush2.msra.mxu0 %v62
    %174 = vmatprep.subr.mxu0 0.0
    %175 = vmatpush2.msra.mxu0 %v61
    %176 = vmatprep.subr.mxu0 0.0
    %177 = vmatpush2.msra.mxu0 %v60
    %178 = vmatprep.subr.mxu0 0.0
    %179 = vmatpush2.msra.mxu0 %v59
    %180 = vmatprep.subr.mxu0 0.0
    %181 = vmatpush2.msra.mxu0 %v58
    %182 = vmatprep.subr.mxu0 0.0
    %183 = vmatpush2.msra.mxu0 %v57
    %184 = vmatprep.subr.mxu0 0.0
    %185 = vmatpush2.msra.mxu0 %v56
    %186 = vmatprep.subr.mxu0 0.0
    %187 = vmatpush2.msra.mxu0 %v55
    %188 = vmatprep.subr.mxu0 0.0
    %189 = vmatpush2.msra.mxu0 %v54
    %190 = vmatprep.subr.mxu0 0.0
    %191 = vmatpush2.msra.mxu0 %v53
    %192 = vmatprep.subr.mxu0 0.0
    %193 = vmatpush2.msra.mxu0 %v52
    %194 = vmatprep.subr.mxu0 0.0
    %195 = vmatpush2.msra.mxu0 %v51
    %196 = vmatprep.subr.mxu0 0.0
    %197 = vmatpush2.msra.mxu0 %v50
    %198 = vmatprep.subr.mxu0 0.0
    %199 = vmatpush2.msra.mxu0 %v49
    %200 = vmatprep.mubr.f32.mxu0 %v28
    %201 = vmatmul.mubr.f32.gmra.mxu0 %v27
    %v202 = vpop.f32.mrf.mxu0
    %v203 = vadd.f32 %v134, %v202
    %v204 = vpop.f32.mrf.mxu0
    %205 = vdwg.mxu0
    %206 = vmatprep.subr.mxu0 0.0
    %207 = vmatpush1.msra.mxu0 %v80
    %208 = vmatprep.subr.mxu0 0.0
    %209 = vmatpush1.msra.mxu0 %v79
    %210 = vmatprep.subr.mxu0 0.0
    %211 = vmatpush1.msra.mxu0 %v78
    %212 = vmatprep.subr.mxu0 0.0
    %213 = vmatpush1.msra.mxu0 %v77
    %214 = vmatprep.subr.mxu0 0.0
    %215 = vmatpush1.msra.mxu0 %v76
    %216 = vmatprep.subr.mxu0 0.0
    %217 = vmatpush1.msra.mxu0 %v75
    %218 = vmatprep.subr.mxu0 0.0
    %219 = vmatpush1.msra.mxu0 %v74
    %220 = vmatprep.subr.mxu0 0.0
    %221 = vmatpush1.msra.mxu0 %v73
    %222 = vmatprep.subr.mxu0 0.0
    %223 = vmatpush1.msra.mxu0 %v72
    %224 = vmatprep.subr.mxu0 0.0
    %225 = vmatpush1.msra.mxu0 %v71
    %226 = vmatprep.subr.mxu0 0.0
    %227 = vmatpush1.msra.mxu0 %v70
    %228 = vmatprep.subr.mxu0 0.0
    %229 = vmatpush1.msra.mxu0 %v69
    %230 = vmatprep.subr.mxu0 0.0
    %231 = vmatpush1.msra.mxu0 %v68
    %232 = vmatprep.subr.mxu0 0.0
    %233 = vmatpush1.msra.mxu0 %v67
    %234 = vmatprep.subr.mxu0 0.0
    %235 = vmatpush1.msra.mxu0 %v66
    %236 = vmatprep.subr.mxu0 0.0
    %237 = vmatpush1.msra.mxu0 %v65
    %238 = vmatprep.subr.mxu0 0.0
    %239 = vmatpush2.msra.mxu0 %v96
    %240 = vmatprep.subr.mxu0 0.0
    %241 = vmatpush2.msra.mxu0 %v95
    %242 = vmatprep.subr.mxu0 0.0
    %243 = vmatpush2.msra.mxu0 %v94
    %244 = vmatprep.subr.mxu0 0.0
    %245 = vmatpush2.msra.mxu0 %v93
    %246 = vmatprep.subr.mxu0 0.0
    %247 = vmatpush2.msra.mxu0 %v92
    %248 = vmatprep.subr.mxu0 0.0
    %249 = vmatpush2.msra.mxu0 %v91
    %250 = vmatprep.subr.mxu0 0.0
    %251 = vmatpush2.msra.mxu0 %v90
    %252 = vmatprep.subr.mxu0 0.0
    %253 = vmatpush2.msra.mxu0 %v89
    %254 = vmatprep.subr.mxu0 0.0
    %255 = vmatpush2.msra.mxu0 %v88
    %256 = vmatprep.subr.mxu0 0.0
    %257 = vmatpush2.msra.mxu0 %v87
    %258 = vmatprep.subr.mxu0 0.0
    %259 = vmatpush2.msra.mxu0 %v86
    %260 = vmatprep.subr.mxu0 0.0
    %261 = vmatpush2.msra.mxu0 %v85
    %262 = vmatprep.subr.mxu0 0.0
    %263 = vmatpush2.msra.mxu0 %v84
    %264 = vmatprep.subr.mxu0 0.0
    %265 = vmatpush2.msra.mxu0 %v83
    %266 = vmatprep.subr.mxu0 0.0
    %267 = vmatpush2.msra.mxu0 %v82
    %268 = vmatprep.subr.mxu0 0.0
    %269 = vmatpush2.msra.mxu0 %v81
    %270 = vmatprep.mubr.f32.mxu0 %v30
    %271 = vmatmul.mubr.f32.gmra.mxu0 %v29
    %v272 = vpop.f32.mrf.mxu0
    %v273 = vadd.f32 %v203, %v272
    %v274 = vpop.f32.mrf.mxu0
    %275 = vdwg.mxu0
    %276 = vmatprep.subr.mxu0 0.0
    %277 = vmatpush1.msra.mxu0 %v112
    %278 = vmatprep.subr.mxu0 0.0
    %279 = vmatpush1.msra.mxu0 %v111
    %280 = vmatprep.subr.mxu0 0.0
    %281 = vmatpush1.msra.mxu0 %v110
    %282 = vmatprep.subr.mxu0 0.0
    %283 = vmatpush1.msra.mxu0 %v109
    %284 = vmatprep.subr.mxu0 0.0
    %285 = vmatpush1.msra.mxu0 %v108
    %286 = vmatprep.subr.mxu0 0.0
    %287 = vmatpush1.msra.mxu0 %v107
    %288 = vmatprep.subr.mxu0 0.0
    %289 = vmatpush1.msra.mxu0 %v106
    %290 = vmatprep.subr.mxu0 0.0
    %291 = vmatpush1.msra.mxu0 %v105
    %292 = vmatprep.subr.mxu0 0.0
    %293 = vmatpush1.msra.mxu0 %v104
    %294 = vmatprep.subr.mxu0 0.0
    %295 = vmatpush1.msra.mxu0 %v103
    %296 = vmatprep.subr.mxu0 0.0
    %297 = vmatpush1.msra.mxu0 %v102
    %298 = vmatprep.subr.mxu0 0.0
    %299 = vmatpush1.msra.mxu0 %v101
    %300 = vmatprep.subr.mxu0 0.0
    %301 = vmatpush1.msra.mxu0 %v100
    %302 = vmatprep.subr.mxu0 0.0
    %303 = vmatpush1.msra.mxu0 %v99
    %304 = vmatprep.subr.mxu0 0.0
    %305 = vmatpush1.msra.mxu0 %v98
    %306 = vmatprep.subr.mxu0 0.0
    %307 = vmatpush1.msra.mxu0 %v97
    %308 = vmatprep.subr.mxu0 0.0
    %309 = vmatpush2.msra.mxu0 %v128
    %310 = vmatprep.subr.mxu0 0.0
    %311 = vmatpush2.msra.mxu0 %v127
    %312 = vmatprep.subr.mxu0 0.0
    %313 = vmatpush2.msra.mxu0 %v126
    %314 = vmatprep.subr.mxu0 0.0
    %315 = vmatpush2.msra.mxu0 %v125
    %316 = vmatprep.subr.mxu0 0.0
    %317 = vmatpush2.msra.mxu0 %v124
    %318 = vmatprep.subr.mxu0 0.0
    %319 = vmatpush2.msra.mxu0 %v123
    %320 = vmatprep.subr.mxu0 0.0
    %321 = vmatpush2.msra.mxu0 %v122
    %322 = vmatprep.subr.mxu0 0.0
    %323 = vmatpush2.msra.mxu0 %v121
    %324 = vmatprep.subr.mxu0 0.0
    %325 = vmatpush2.msra.mxu0 %v120
    %326 = vmatprep.subr.mxu0 0.0
    %327 = vmatpush2.msra.mxu0 %v119
    %328 = vmatprep.subr.mxu0 0.0
    %329 = vmatpush2.msra.mxu0 %v118
    %330 = vmatprep.subr.mxu0 0.0
    %331 = vmatpush2.msra.mxu0 %v117
    %332 = vmatprep.subr.mxu0 0.0
    %333 = vmatpush2.msra.mxu0 %v116
    %334 = vmatprep.subr.mxu0 0.0
    %335 = vmatpush2.msra.mxu0 %v115
    %336 = vmatprep.subr.mxu0 0.0
    %337 = vmatpush2.msra.mxu0 %v114
    %338 = vmatprep.subr.mxu0 0.0
    %339 = vmatpush2.msra.mxu0 %v113
    %340 = vmatprep.mubr.f32.mxu0 %v32
    %341 = vmatmul.mubr.f32.gmra.mxu0 %v31
    %v342 = vpop.f32.mrf.mxu0
    %v343 = vadd.f32 %v273, %v342
    %v344 = vpop.f32.mrf.mxu0
    %345 = vdwg.mxu0
    %v346 = vld [vmem:[%s3] sm:$0xff]
    %v347 = vld [vmem:[%s3 + $0x8] sm:$0xff]
    %v348 = vld [vmem:[%s3 + $0x10] sm:$0xff]
    %v349 = vld [vmem:[%s3 + $0x18] sm:$0xff]
    %v350 = vld [vmem:[%s3 + $0x20] sm:$0xff]
    %v351 = vld [vmem:[%s3 + $0x28] sm:$0xff]
    %v352 = vld [vmem:[%s3 + $0x30] sm:$0xff]
    %v353 = vld [vmem:[%s3 + $0x38] sm:$0xff]
    %v354 = vld [vmem:[%s4] sm:$0x1]
    %v356 = vlaneseq
    %v357 = vshrl.u32 %v356, 7
    %v358 = vsub.s32 0, %v357
    %v359 = vrot.slane %v354, %v358
    %vm361 = vcmask 523264
    %v363 = vsel %vm361, %v343, 0
    %365 = vmatprep.subr.mxu0 0.0
    %366 = vmatpush1.msra.mxu0 0.0
    %367 = vmatprep.subr.mxu0 0.0
    %368 = vmatpush1.msra.mxu0 0.0
    %369 = vmatprep.subr.mxu0 0.0
    %370 = vmatpush1.msra.mxu0 0.0
    %371 = vmatprep.subr.mxu0 0.0
    %372 = vmatpush1.msra.mxu0 0.0
    %373 = vmatprep.subr.mxu0 0.0
    %374 = vmatpush1.msra.mxu0 0.0
    %375 = vmatprep.subr.mxu0 0.0
    %376 = vmatpush1.msra.mxu0 0.0
    %377 = vmatprep.subr.mxu0 0.0
    %378 = vmatpush1.msra.mxu0 0.0
    %379 = vmatprep.subr.mxu0 0.0
    %380 = vmatpush1.msra.mxu0 0.0
    %381 = vmatprep.subr.mxu0 0.0
    %382 = vmatpush1.msra.mxu0 %v353
    %383 = vmatprep.subr.mxu0 0.0
    %384 = vmatpush1.msra.mxu0 %v352
    %385 = vmatprep.subr.mxu0 0.0
    %386 = vmatpush1.msra.mxu0 %v351
    %387 = vmatprep.subr.mxu0 0.0
    %388 = vmatpush1.msra.mxu0 %v350
    %389 = vmatprep.subr.mxu0 0.0
    %390 = vmatpush1.msra.mxu0 %v349
    %391 = vmatprep.subr.mxu0 0.0
    %392 = vmatpush1.msra.mxu0 %v348
    %393 = vmatprep.subr.mxu0 0.0
    %394 = vmatpush1.msra.mxu0 %v347
    %395 = vmatprep.subr.mxu0 0.0
    %396 = vmatpush1.msra.mxu0 %v346
    %397 = vmatprep.subr.mxu0 0.0
    %398 = vmatpush2.msra.mxu0 0.0
    %399 = vmatprep.subr.mxu0 0.0
    %400 = vmatpush2.msra.mxu0 0.0
    %401 = vmatprep.subr.mxu0 0.0
    %402 = vmatpush2.msra.mxu0 0.0
    %403 = vmatprep.subr.mxu0 0.0
    %404 = vmatpush2.msra.mxu0 0.0
    %405 = vmatprep.subr.mxu0 0.0
    %406 = vmatpush2.msra.mxu0 0.0
    %407 = vmatprep.subr.mxu0 0.0
    %408 = vmatpush2.msra.mxu0 0.0
    %409 = vmatprep.subr.mxu0 0.0
    %410 = vmatpush2.msra.mxu0 0.0
    %411 = vmatprep.subr.mxu0 0.0
    %412 = vmatpush2.msra.mxu0 0.0
    %413 = vmatprep.subr.mxu0 0.0
    %414 = vmatpush2.msra.mxu0 0.0
    %415 = vmatprep.subr.mxu0 0.0
    %416 = vmatpush2.msra.mxu0 0.0
    %417 = vmatprep.subr.mxu0 0.0
    %418 = vmatpush2.msra.mxu0 0.0
    %419 = vmatprep.subr.mxu0 0.0
    %420 = vmatpush2.msra.mxu0 0.0
    %421 = vmatprep.subr.mxu0 0.0
    %422 = vmatpush2.msra.mxu0 0.0
    %423 = vmatprep.subr.mxu0 0.0
    %424 = vmatpush2.msra.mxu0 0.0
    %425 = vmatprep.subr.mxu0 0.0
    %426 = vmatpush2.msra.mxu0 0.0
    %427 = vmatprep.subr.mxu0 0.0
    %428 = vmatpush2.msra.mxu0 0.0
    %429 = vmatprep.mubr.f32.mxu0 0.0
    %430 = vmatmul.mubr.f32.gmra.mxu0 %v363
    %v431 = vpop.f32.mrf.mxu0
    %v432 = vadd.f32 %v359, %v431
    %v433 = vpop.f32.mrf.mxu0
    %434 = vdwg.mxu0
    %v435 = vld [vmem:[%s5] sm:$0xff]
    %v436 = vld [vmem:[%s5 + $0x8] sm:$0xff]
    %v437 = vld [vmem:[%s5 + $0x10] sm:$0xff]
    %v438 = vld [vmem:[%s5 + $0x18] sm:$0xff]
    %v439 = vld [vmem:[%s5 + $0x20] sm:$0xff]
    %v440 = vld [vmem:[%s5 + $0x28] sm:$0xff]
    %v441 = vld [vmem:[%s5 + $0x30] sm:$0xff]
    %v442 = vld [vmem:[%s5 + $0x38] sm:$0xff]
    %v443 = vld [vmem:[%s5 + $0x40] sm:$0xff]
    %v444 = vld [vmem:[%s5 + $0x48] sm:$0xff]
    %v445 = vld [vmem:[%s5 + $0x50] sm:$0xff]
    %v446 = vld [vmem:[%s5 + $0x58] sm:$0xff]
    %v447 = vld [vmem:[%s5 + $0x60] sm:$0xff]
    %v448 = vld [vmem:[%s5 + $0x68] sm:$0xff]
    %v449 = vld [vmem:[%s5 + $0x70] sm:$0xff]
    %v450 = vld [vmem:[%s5 + $0x78] sm:$0xff]
    %v451 = vld [vmem:[%s5 + $0x80] sm:$0xff]
    %v452 = vld [vmem:[%s5 + $0x88] sm:$0xff]
    %v453 = vld [vmem:[%s5 + $0x90] sm:$0xff]
    %v454 = vld [vmem:[%s5 + $0x98] sm:$0xff]
    %v455 = vld [vmem:[%s5 + $0xa0] sm:$0xff]
    %v456 = vld [vmem:[%s5 + $0xa8] sm:$0xff]
    %v457 = vld [vmem:[%s5 + $0xb0] sm:$0xff]
    %v458 = vld [vmem:[%s5 + $0xb8] sm:$0xff]
    %v459 = vld [vmem:[%s5 + $0xc0] sm:$0xff]
    %v460 = vld [vmem:[%s5 + $0xc8] sm:$0xff]
    %v461 = vld [vmem:[%s5 + $0xd0] sm:$0xff]
    %v462 = vld [vmem:[%s5 + $0xd8] sm:$0xff]
    %v463 = vld [vmem:[%s5 + $0xe0] sm:$0xff]
    %v464 = vld [vmem:[%s5 + $0xe8] sm:$0xff]
    %v465 = vld [vmem:[%s5 + $0xf0] sm:$0xff]
    %v466 = vld [vmem:[%s5 + $0xf8] sm:$0xff]
    %v467 = vld [vmem:[%s5 + $0x100] sm:$0xff]
    %v468 = vld [vmem:[%s5 + $0x108] sm:$0xff]
    %v469 = vld [vmem:[%s5 + $0x110] sm:$0xff]
    %v470 = vld [vmem:[%s5 + $0x118] sm:$0xff]
    %v471 = vld [vmem:[%s5 + $0x120] sm:$0xff]
    %v472 = vld [vmem:[%s5 + $0x128] sm:$0xff]
    %v473 = vld [vmem:[%s5 + $0x130] sm:$0xff]
    %v474 = vld [vmem:[%s5 + $0x138] sm:$0xff]
    %v475 = vld [vmem:[%s5 + $0x140] sm:$0xff]
    %v476 = vld [vmem:[%s5 + $0x148] sm:$0xff]
    %v477 = vld [vmem:[%s5 + $0x150] sm:$0xff]
    %v478 = vld [vmem:[%s5 + $0x158] sm:$0xff]
    %v479 = vld [vmem:[%s5 + $0x160] sm:$0xff]
    %v480 = vld [vmem:[%s5 + $0x168] sm:$0xff]
    %v481 = vld [vmem:[%s5 + $0x170] sm:$0xff]
    %v482 = vld [vmem:[%s5 + $0x178] sm:$0xff]
    %v483 = vld [vmem:[%s6] sm:$0x3f]
    %v485 = vlaneseq
    %v486 = vshrl.u32 %v485, 7
    %v487 = vsub.s32 0, %v486
    %v488 = vrot.slane %v483, %v487
    %v489 = vlaneseq
    %v490 = vshrl.u32 %v489, 7
    %v491 = vsub.s32 1, %v490
    %v492 = vrot.slane %v483, %v491
    %v493 = vlaneseq
    %v494 = vshrl.u32 %v493, 7
    %v495 = vsub.s32 2, %v494
    %v496 = vrot.slane %v483, %v495
    %v497 = vlaneseq
    %v498 = vshrl.u32 %v497, 7
    %v499 = vsub.s32 3, %v498
    %v500 = vrot.slane %v483, %v499
    %v501 = vlaneseq
    %v502 = vshrl.u32 %v501, 7
    %v503 = vsub.s32 4, %v502
    %v504 = vrot.slane %v483, %v503
    %v505 = vlaneseq
    %v506 = vshrl.u32 %v505, 7
    %v507 = vsub.s32 5, %v506
    %v508 = vrot.slane %v483, %v507
    %v516 = vsel %vm361, %v432, 0
    %518 = vmatprep.subr.mxu0 0.0
    %519 = vmatpush1.msra.mxu0 0.0
    %520 = vmatprep.subr.mxu0 0.0
    %521 = vmatpush1.msra.mxu0 0.0
    %522 = vmatprep.subr.mxu0 0.0
    %523 = vmatpush1.msra.mxu0 0.0
    %524 = vmatprep.subr.mxu0 0.0
    %525 = vmatpush1.msra.mxu0 0.0
    %526 = vmatprep.subr.mxu0 0.0
    %527 = vmatpush1.msra.mxu0 0.0
    %528 = vmatprep.subr.mxu0 0.0
    %529 = vmatpush1.msra.mxu0 0.0
    %530 = vmatprep.subr.mxu0 0.0
    %531 = vmatpush1.msra.mxu0 0.0
    %532 = vmatprep.subr.mxu0 0.0
    %533 = vmatpush1.msra.mxu0 0.0
    %534 = vmatprep.subr.mxu0 %v478
    %535 = vmatpush1.msra.mxu0 %v477
    %536 = vmatprep.subr.mxu0 %v472
    %537 = vmatpush1.msra.mxu0 %v471
    %538 = vmatprep.subr.mxu0 %v466
    %539 = vmatpush1.msra.mxu0 %v465
    %540 = vmatprep.subr.mxu0 %v460
    %541 = vmatpush1.msra.mxu0 %v459
    %542 = vmatprep.subr.mxu0 %v454
    %543 = vmatpush1.msra.mxu0 %v453
    %544 = vmatprep.subr.mxu0 %v448
    %545 = vmatpush1.msra.mxu0 %v447
    %546 = vmatprep.subr.mxu0 %v442
    %547 = vmatpush1.msra.mxu0 %v441
    %548 = vmatprep.subr.mxu0 %v436
    %549 = vmatpush1.msra.mxu0 %v435
    %550 = vmatprep.subr.mxu0 0.0
    %551 = vmatpush2.msra.mxu0 0.0
    %552 = vmatprep.subr.mxu0 0.0
    %553 = vmatpush2.msra.mxu0 0.0
    %554 = vmatprep.subr.mxu0 0.0
    %555 = vmatpush2.msra.mxu0 0.0
    %556 = vmatprep.subr.mxu0 0.0
    %557 = vmatpush2.msra.mxu0 0.0
    %558 = vmatprep.subr.mxu0 0.0
    %559 = vmatpush2.msra.mxu0 0.0
    %560 = vmatprep.subr.mxu0 0.0
    %561 = vmatpush2.msra.mxu0 0.0
    %562 = vmatprep.subr.mxu0 0.0
    %563 = vmatpush2.msra.mxu0 0.0
    %564 = vmatprep.subr.mxu0 0.0
    %565 = vmatpush2.msra.mxu0 0.0
    %566 = vmatprep.subr.mxu0 0.0
    %567 = vmatpush2.msra.mxu0 0.0
    %568 = vmatprep.subr.mxu0 0.0
    %569 = vmatpush2.msra.mxu0 0.0
    %570 = vmatprep.subr.mxu0 0.0
    %571 = vmatpush2.msra.mxu0 0.0
    %572 = vmatprep.subr.mxu0 0.0
    %573 = vmatpush2.msra.mxu0 0.0
    %574 = vmatprep.subr.mxu0 0.0
    %575 = vmatpush2.msra.mxu0 0.0
    %576 = vmatprep.subr.mxu0 0.0
    %577 = vmatpush2.msra.mxu0 0.0
    %578 = vmatprep.subr.mxu0 0.0
    %579 = vmatpush2.msra.mxu0 0.0
    %580 = vmatprep.subr.mxu0 0.0
    %581 = vmatpush2.msra.mxu0 0.0
    %582 = vmatprep.mubr.f32.mxu0 0.0
    %583 = vmatmul.mubr.f32.gmra.mxu0 %v516
    %v584 = vpop.f32.mrf.mxu0
    %v585 = vadd.f32 %v488, %v584
    %v586 = vpop.f32.mrf.mxu0
    %v587 = vadd.f32 %v492, %v586
    %588 = vdwg.mxu0
    %589 = vmatprep.subr.mxu0 0.0
    %590 = vmatpush1.msra.mxu0 0.0
    %591 = vmatprep.subr.mxu0 0.0
    %592 = vmatpush1.msra.mxu0 0.0
    %593 = vmatprep.subr.mxu0 0.0
    %594 = vmatpush1.msra.mxu0 0.0
    %595 = vmatprep.subr.mxu0 0.0
    %596 = vmatpush1.msra.mxu0 0.0
    %597 = vmatprep.subr.mxu0 0.0
    %598 = vmatpush1.msra.mxu0 0.0
    %599 = vmatprep.subr.mxu0 0.0
    %600 = vmatpush1.msra.mxu0 0.0
    %601 = vmatprep.subr.mxu0 0.0
    %602 = vmatpush1.msra.mxu0 0.0
    %603 = vmatprep.subr.mxu0 0.0
    %604 = vmatpush1.msra.mxu0 0.0
    %605 = vmatprep.subr.mxu0 %v480
    %606 = vmatpush1.msra.mxu0 %v479
    %607 = vmatprep.subr.mxu0 %v474
    %608 = vmatpush1.msra.mxu0 %v473
    %609 = vmatprep.subr.mxu0 %v468
    %610 = vmatpush1.msra.mxu0 %v467
    %611 = vmatprep.subr.mxu0 %v462
    %612 = vmatpush1.msra.mxu0 %v461
    %613 = vmatprep.subr.mxu0 %v456
    %614 = vmatpush1.msra.mxu0 %v455
    %615 = vmatprep.subr.mxu0 %v450
    %616 = vmatpush1.msra.mxu0 %v449
    %617 = vmatprep.subr.mxu0 %v444
    %618 = vmatpush1.msra.mxu0 %v443
    %619 = vmatprep.subr.mxu0 %v438
    %620 = vmatpush1.msra.mxu0 %v437
    %621 = vmatprep.subr.mxu0 0.0
    %622 = vmatpush2.msra.mxu0 0.0
    %623 = vmatprep.subr.mxu0 0.0
    %624 = vmatpush2.msra.mxu0 0.0
    %625 = vmatprep.subr.mxu0 0.0
    %626 = vmatpush2.msra.mxu0 0.0
    %627 = vmatprep.subr.mxu0 0.0
    %628 = vmatpush2.msra.mxu0 0.0
    %629 = vmatprep.subr.mxu0 0.0
    %630 = vmatpush2.msra.mxu0 0.0
    %631 = vmatprep.subr.mxu0 0.0
    %632 = vmatpush2.msra.mxu0 0.0
    %633 = vmatprep.subr.mxu0 0.0
    %634 = vmatpush2.msra.mxu0 0.0
    %635 = vmatprep.subr.mxu0 0.0
    %636 = vmatpush2.msra.mxu0 0.0
    %637 = vmatprep.subr.mxu0 0.0
    %638 = vmatpush2.msra.mxu0 0.0
    %639 = vmatprep.subr.mxu0 0.0
    %640 = vmatpush2.msra.mxu0 0.0
    %641 = vmatprep.subr.mxu0 0.0
    %642 = vmatpush2.msra.mxu0 0.0
    %643 = vmatprep.subr.mxu0 0.0
    %644 = vmatpush2.msra.mxu0 0.0
    %645 = vmatprep.subr.mxu0 0.0
    %646 = vmatpush2.msra.mxu0 0.0
    %647 = vmatprep.subr.mxu0 0.0
    %648 = vmatpush2.msra.mxu0 0.0
    %649 = vmatprep.subr.mxu0 0.0
    %650 = vmatpush2.msra.mxu0 0.0
    %651 = vmatprep.subr.mxu0 0.0
    %652 = vmatpush2.msra.mxu0 0.0
    %653 = vmatprep.mubr.f32.mxu0 0.0
    %654 = vmatmul.mubr.f32.gmra.mxu0 %v516
    %v655 = vpop.f32.mrf.mxu0
    %v656 = vadd.f32 %v496, %v655
    %v657 = vpop.f32.mrf.mxu0
    %v658 = vadd.f32 %v500, %v657
    %659 = vdwg.mxu0
    %660 = vmatprep.subr.mxu0 0.0
    %661 = vmatpush1.msra.mxu0 0.0
    %662 = vmatprep.subr.mxu0 0.0
    %663 = vmatpush1.msra.mxu0 0.0
    %664 = vmatprep.subr.mxu0 0.0
    %665 = vmatpush1.msra.mxu0 0.0
    %666 = vmatprep.subr.mxu0 0.0
    %667 = vmatpush1.msra.mxu0 0.0
    %668 = vmatprep.subr.mxu0 0.0
    %669 = vmatpush1.msra.mxu0 0.0
    %670 = vmatprep.subr.mxu0 0.0
    %671 = vmatpush1.msra.mxu0 0.0
    %672 = vmatprep.subr.mxu0 0.0
    %673 = vmatpush1.msra.mxu0 0.0
    %674 = vmatprep.subr.mxu0 0.0
    %675 = vmatpush1.msra.mxu0 0.0
    %676 = vmatprep.subr.mxu0 %v482
    %677 = vmatpush1.msra.mxu0 %v481
    %678 = vmatprep.subr.mxu0 %v476
    %679 = vmatpush1.msra.mxu0 %v475
    %680 = vmatprep.subr.mxu0 %v470
    %681 = vmatpush1.msra.mxu0 %v469
    %682 = vmatprep.subr.mxu0 %v464
    %683 = vmatpush1.msra.mxu0 %v463
    %684 = vmatprep.subr.mxu0 %v458
    %685 = vmatpush1.msra.mxu0 %v457
    %686 = vmatprep.subr.mxu0 %v452
    %687 = vmatpush1.msra.mxu0 %v451
    %688 = vmatprep.subr.mxu0 %v446
    %689 = vmatpush1.msra.mxu0 %v445
    %690 = vmatprep.subr.mxu0 %v440
    %691 = vmatpush1.msra.mxu0 %v439
    %692 = vmatprep.subr.mxu0 0.0
    %693 = vmatpush2.msra.mxu0 0.0
    %694 = vmatprep.subr.mxu0 0.0
    %695 = vmatpush2.msra.mxu0 0.0
    %696 = vmatprep.subr.mxu0 0.0
    %697 = vmatpush2.msra.mxu0 0.0
    %698 = vmatprep.subr.mxu0 0.0
    %699 = vmatpush2.msra.mxu0 0.0
    %700 = vmatprep.subr.mxu0 0.0
    %701 = vmatpush2.msra.mxu0 0.0
    %702 = vmatprep.subr.mxu0 0.0
    %703 = vmatpush2.msra.mxu0 0.0
    %704 = vmatprep.subr.mxu0 0.0
    %705 = vmatpush2.msra.mxu0 0.0
    %706 = vmatprep.subr.mxu0 0.0
    %707 = vmatpush2.msra.mxu0 0.0
    %708 = vmatprep.subr.mxu0 0.0
    %709 = vmatpush2.msra.mxu0 0.0
    %710 = vmatprep.subr.mxu0 0.0
    %711 = vmatpush2.msra.mxu0 0.0
    %712 = vmatprep.subr.mxu0 0.0
    %713 = vmatpush2.msra.mxu0 0.0
    %714 = vmatprep.subr.mxu0 0.0
    %715 = vmatpush2.msra.mxu0 0.0
    %716 = vmatprep.subr.mxu0 0.0
    %717 = vmatpush2.msra.mxu0 0.0
    %718 = vmatprep.subr.mxu0 0.0
    %719 = vmatpush2.msra.mxu0 0.0
    %720 = vmatprep.subr.mxu0 0.0
    %721 = vmatpush2.msra.mxu0 0.0
    %722 = vmatprep.subr.mxu0 0.0
    %723 = vmatpush2.msra.mxu0 0.0
    %724 = vmatprep.mubr.f32.mxu0 0.0
    %725 = vmatmul.mubr.f32.gmra.mxu0 %v516
    %v726 = vpop.f32.mrf.mxu0
    %v727 = vadd.f32 %v504, %v726
    %v728 = vpop.f32.mrf.mxu0
    %v729 = vadd.f32 %v508, %v728
    %730 = vdwg.mxu0
    %731 = vst [vmem:[#allocation2] sm:$0xff] %v585
    %732 = vst [vmem:[#allocation2 + $0x8] sm:$0xff] %v587
    %733 = vst [vmem:[#allocation2 + $0x10] sm:$0xff] %v656
    %734 = vst [vmem:[#allocation2 + $0x18] sm:$0xff] %v658
    %735 = vst [vmem:[#allocation2 + $0x20] sm:$0xff] %v727
    %736 = vst [vmem:[#allocation2 + $0x28] sm:$0xff] %v729
    // Predicated region
    $region30: #{tpu_custom_call.1} parent=1 // pred_check
      _
    $region31: #{tpu_custom_call.1} parent=1 // pred_check_branch
      %738 = sbr.rel (0) target = $region33
    $region32: #{tpu_custom_call.1} parent=1 // pred_region
      %s740 = ssub.s32 768, 768
      %741 = vsyncadd [#allocation3], %s740
      %s743 = sshll.u32 [#allocation2], 4
      %s744 = int_to_ptr.vmem [resolvable:$true] %s743
      %746 = dma.vmem_to_hbm [thread:$0]  %s744, 768, %s7, [#allocation3]
    $region33: #{tpu_custom_call.1} parent=1 // pred_fallthru
      _
    // Predicated region
    $region34: #{tpu_custom_call.1} parent=1 // pred_check
      _
    $region35: #{tpu_custom_call.1} parent=1 // pred_check_branch
      %748 = sbr.rel (0) target = $region37
    $region36: #{tpu_custom_call.1} parent=1 // pred_region
      %749 = dma.done [#allocation3], 768
    $region37: #{tpu_custom_call.1} parent=1 // pred_fallthru
      _
    %750 = vsyncpa [#allocation3], 1

</llo_original>
